<compile_context>
chip_gen: v5e
topology: v5e:2x2
jax: 0.10.0
libtpu: 0.0.40
codegen_flags: <defaults>
</compile_context>

<pallas_src>
import jax
import jax.numpy as jnp
from jax.experimental import pallas as pl
from jax.experimental.pallas import tpu as pltpu

EPSILON = 25.0 ** (-2)  # matches VISLoss.__init__ default

# Per-input-tile VMEM byte budgets.  With 2 inputs x 2 pipeline buffers plus
# in-kernel temporaries this stays comfortably under the explicit 32 MiB
# scoped-VMEM limit on every generation (v5e default is only 16 MiB, so the
# limit is raised explicitly below).
_DENSE_TILE_BYTES = 4 * 1024 * 1024   # (1, C, TS, 128) blocks: no sublane pad
_LANE_TILE_BYTES = 2 * 1024 * 1024    # (1, C, TN) blocks: C pads to 8 sublanes
_VMEM_LIMIT_BYTES = 32 * 1024 * 1024


def _tree_fold(x, size, unit, axis):
    """Sum `size` elements (a multiple of `unit`) along `axis` down to `unit`.

    Only static, `unit`-aligned slices and big VPU adds (log2(size/unit) of
    them plus a small carry), so no relayout / no huge unrolled loops.
    """
    carry = None
    while size > unit:
        n = size // unit
        if n % 2:
            tail = jax.lax.slice_in_dim(x, (n - 1) * unit, n * unit, axis=axis)
            carry = tail if carry is None else carry + tail
            n -= 1
            size = n * unit
            x = jax.lax.slice_in_dim(x, 0, size, axis=axis)
        half = size // 2
        x = (jax.lax.slice_in_dim(x, 0, half, axis=axis)
             + jax.lax.slice_in_dim(x, half, size, axis=axis))
        size = half
    if carry is not None:
        x = x + carry
    return x


def _make_dense_kernel(n_sub: int, ts: int, out_sub: int, n_chan: int,
                       epsilon: float):
    """Kernel for inputs viewed as (B, C, NS, 128); blocks (1, C, TS, 128)."""
    needs_mask = (n_sub % ts) != 0

    def kernel(o_ref, t_ref, out_ref):
        nb = pl.program_id(1)

        # ||output - target||^2 per point, accumulated channel by channel to
        # keep live VMEM temporaries small.  Every slab is a dense (TS, 128)
        # array -> full 8x128 vregs for the VPU subtract/square and EUP log.
        r2 = None
        for c in range(n_chan):
            d = (o_ref[0, c].astype(jnp.float32)
                 - t_ref[0, c].astype(jnp.float32))      # (TS, 128)
            sq = d * d
            r2 = sq if r2 is None else r2 + sq
        per_point = jnp.log(epsilon + r2)                 # (TS, 128)

        if needs_mask:
            # Ragged last tile along the sublane axis: zero the garbage rows.
            # Must be a select (jnp.where), not an arithmetic mask, because
            # the unselected branch may hold NaN/Inf from uninitialized data.
            sub = jax.lax.broadcasted_iota(jnp.int32, per_point.shape, 0)
            per_point = jnp.where(nb * ts + sub < n_sub, per_point, 0.0)

        # Fold TS sublane rows -> out_sub (<=8); lane-dense (x,128) store.
        out_ref[0, 0] = _tree_fold(per_point, ts, out_sub, axis=0)

    return kernel


def _make_lane_kernel(n_points: int, tn: int, out_lanes: int, epsilon: float):
    """Fallback kernel (N not a multiple of 128); blocks (1, C, TN)."""
    needs_mask = (n_points % tn) != 0

    def kernel(o_ref, t_ref, out_ref):
        nb = pl.program_id(1)

        @pl.when(nb == 0)
        def _init():
            out_ref[...] = jnp.zeros_like(out_ref)

        o = o_ref[...].astype(jnp.float32)
        t = t_ref[...].astype(jnp.float32)
        d = o - t                                         # (1, C, TN)
        r2 = jnp.sum(d * d, axis=1, keepdims=True)        # (1, 1, TN)
        per_point = jnp.log(epsilon + r2)

        if needs_mask:
            lane = jax.lax.broadcasted_iota(jnp.int32, per_point.shape, 2)
            per_point = jnp.where(nb * tn + lane < n_points, per_point, 0.0)

        out_ref[...] += _tree_fold(per_point, tn, out_lanes, axis=2)

    return kernel


def vis_loss(output: jax.Array, target: jax.Array, *,
             epsilon: float = EPSILON) -> jax.Array:
    """Pallas implementation of VISLoss.forward.  Returns a scalar f32."""
    assert output.shape == target.shape and output.ndim == 3
    B, C, N = output.shape
    itemsize = jnp.dtype(output.dtype).itemsize

    if N >= 128 and N % 128 == 0:
        # ---- Dense path: points viewed as (NS, 128) -> full 8x128 vregs ----
        NS = N // 128
        o4 = output.reshape(B, C, NS, 128)   # free row-major split of last dim
        t4 = target.reshape(B, C, NS, 128)

        ts_budget = max(8, (_DENSE_TILE_BYTES // (C * 128 * itemsize)) // 8 * 8)
        TS = NS if NS < 8 else min(ts_budget, (NS // 8) * 8)
        out_sub = min(TS, 8)
        n_blocks = pl.cdiv(NS, TS)

        kernel = _make_dense_kernel(NS, TS, out_sub, C, float(epsilon))
        partials = pl.pallas_call(
            kernel,
            out_shape=jax.ShapeDtypeStruct((B, n_blocks, out_sub, 128),
                                           jnp.float32),
            grid_spec=pltpu.PrefetchScalarGridSpec(
                num_scalar_prefetch=0,
                grid=(B, n_blocks),
                in_specs=[
                    pl.BlockSpec((1, C, TS, 128), lambda b, n: (b, 0, n, 0)),
                    pl.BlockSpec((1, C, TS, 128), lambda b, n: (b, 0, n, 0)),
                ],
                out_specs=pl.BlockSpec((1, 1, out_sub, 128),
                                       lambda b, n: (b, n, 0, 0)),
            ),
            compiler_params=pltpu.CompilerParams(
                # Independent per-block partial sums -> both axes parallel.
                dimension_semantics=("parallel", "parallel"),
                vmem_limit_bytes=_VMEM_LIMIT_BYTES,
            ),
            cost_estimate=pl.CostEstimate(
                flops=int((3 * C + 1) * B * N),
                transcendentals=int(B * N),
                bytes_accessed=int(2 * B * C * N * itemsize
                                   + B * n_blocks * out_sub * 128 * 4),
            ),
        )(o4, t4)
        per_batch = jnp.sum(partials, axis=(1, 2, 3))      # (B,)
    else:
        # ---- Fallback: arbitrary N, points on the lane axis, no padding ----
        c_pad = ((C + 7) // 8) * 8   # VMEM sublane padding of the (C, TN) tile
        tn_budget = max(128,
                        (_LANE_TILE_BYTES // (c_pad * itemsize)) // 128 * 128)
        TN = N if N < 128 else min(tn_budget, (N // 128) * 128)
        out_lanes = min(TN, 128)
        n_blocks = pl.cdiv(N, TN)

        kernel = _make_lane_kernel(N, TN, out_lanes, float(epsilon))
        partials = pl.pallas_call(
            kernel,
            out_shape=jax.ShapeDtypeStruct((B, 1, out_lanes), jnp.float32),
            grid_spec=pltpu.PrefetchScalarGridSpec(
                num_scalar_prefetch=0,
                grid=(B, n_blocks),
                in_specs=[
                    pl.BlockSpec((1, C, TN), lambda b, n: (b, 0, n)),
                    pl.BlockSpec((1, C, TN), lambda b, n: (b, 0, n)),
                ],
                out_specs=pl.BlockSpec((1, 1, out_lanes),
                                       lambda b, n: (b, 0, 0)),
            ),
            compiler_params=pltpu.CompilerParams(
                dimension_semantics=("parallel", "arbitrary"),
                vmem_limit_bytes=_VMEM_LIMIT_BYTES,
            ),
            cost_estimate=pl.CostEstimate(
                flops=int((3 * C + 1) * B * N),
                transcendentals=int(B * N),
                bytes_accessed=int(2 * B * C * N * itemsize + B * out_lanes * 4),
            ),
        )(output, target)
        per_batch = jnp.sum(partials, axis=(1, 2))          # (B,)

    # Batch mean (matches loss.mean() in PyTorch).
    return jnp.mean(per_batch)


def _vis_loss_ref(output: jax.Array, target: jax.Array,
                  epsilon: float = EPSILON) -> jax.Array:
    # Pure-JAX reference mirroring the PyTorch loop.
    d = output.astype(jnp.float32) - target.astype(jnp.float32)
    r2 = jnp.sum(d * d, axis=1)                        # (B, N)
    loss = jnp.sum(jnp.log(epsilon + r2), axis=1)      # (B,)
    return jnp.mean(loss)


if __name__ == "__main__":
    key = jax.random.PRNGKey(0)
    subkeys = jax.random.split(key, 4)
    loss_fn = jax.jit(vis_loss)

    # Small shapes consistent with the PyTorch module: (batch, vec-dim, points).
    cases = [
        (2, 4, 16),     # tiny: lane path, single block, no mask
        (2, 4, 300),    # lane path: multi-block accumulate + ragged-tile mask
        (3, 4, 640),    # dense path: NS=5 (<8 sublanes), single block
        (2, 3, 2176),   # dense path: NS=17 -> multi-block + sublane mask
    ]
    for case_idx, (B, C, N) in enumerate(cases):
        k1, k2 = jax.random.split(subkeys[case_idx], 2)
        out = jax.random.normal(k1, (B, C, N), dtype=jnp.float32)
        tgt = jax.random.normal(k2, (B, C, N), dtype=jnp.float32)
        got = loss_fn(out, tgt)
        jax.block_until_ready(got)
        want = _vis_loss_ref(out, tgt)
        if not jnp.allclose(got, want, rtol=1e-4, atol=1e-4):
            raise AssertionError(
                f"mismatch for shape {(B, C, N)}: pallas={got} ref={want}")

    print("KERNEL_OK")
</pallas_src>

<mosaic_0001>
module attributes {stable_mosaic.version = 11 : i64} {
  func.func @kernel(%arg0: i32, %arg1: i32, %arg2: memref<1x4x16xf32, #tpu.memory_space<vmem>>, %arg3: memref<1x4x16xf32, #tpu.memory_space<vmem>>, %arg4: memref<1x1x16xf32, #tpu.memory_space<vmem>>) attributes {dimension_semantics = [#tpu.dimension_semantics<parallel>, #tpu.dimension_semantics<arbitrary>], iteration_bounds = array<i64: 2, 1>, scalar_prefetch = 0 : i64, scratch_operands = 0 : i64, tpu.core_type = #tpu.core_type<tc>, window_params = [{transform_indices = @transform_0, window_bounds = array<i64: 1, 4, 16>}, {transform_indices = @transform_1, window_bounds = array<i64: 1, 4, 16>}, {transform_indices = @transform_2, window_bounds = array<i64: 1, 1, 16>}]} {
    %c0_i32 = arith.constant 0 : i32
    %0 = arith.cmpi eq, %arg1, %c0_i32 : i32
    %1 = arith.extui %0 : i1 to i32
    %c0_i32_0 = arith.constant 0 : i32
    %2 = arith.cmpi ne, %1, %c0_i32_0 : i32
    scf.if %2 {
      %cst_13 = arith.constant 0.000000e+00 : f32
      %15 = vector.broadcast %cst_13 : f32 to vector<1x1x16xf32>
      %c0_14 = arith.constant 0 : index
      %c0_15 = arith.constant 0 : index
      %c0_16 = arith.constant 0 : index
      %16 = vector.load %arg4[%c0_14, %c0_15, %c0_16] : memref<1x1x16xf32, #tpu.memory_space<vmem>>, vector<1x1x16xf32>
      tpu.vector_store %arg4[%c0_14, %c0_15, %c0_16], %15 {strides = array<i32>} : memref<1x1x16xf32, #tpu.memory_space<vmem>>, vector<1x1x16xf32>,
    } else {
    }
    %c0 = arith.constant 0 : index
    %c0_1 = arith.constant 0 : index
    %c0_2 = arith.constant 0 : index
    %3 = vector.load %arg2[%c0, %c0_1, %c0_2] : memref<1x4x16xf32, #tpu.memory_space<vmem>>, vector<1x4x16xf32>
    %c0_3 = arith.constant 0 : index
    %c0_4 = arith.constant 0 : index
    %c0_5 = arith.constant 0 : index
    %4 = vector.load %arg3[%c0_3, %c0_4, %c0_5] : memref<1x4x16xf32, #tpu.memory_space<vmem>>, vector<1x4x16xf32>
    %5 = arith.subf %3, %4 : vector<1x4x16xf32>
    %6 = arith.mulf %5, %5 : vector<1x4x16xf32>
    %cst = arith.constant dense<0.000000e+00> : vector<1x16xf32>
    %7 = vector.multi_reduction <add>, %6, %cst [1] : vector<1x4x16xf32> to vector<1x16xf32>
    %8 = vector.shape_cast %7 : vector<1x16xf32> to vector<1x1x16xf32>
    %cst_6 = arith.constant 1.600000e-03 : f32
    %9 = vector.broadcast %cst_6 : f32 to vector<1x1x16xf32>
    %10 = arith.addf %9, %8 : vector<1x1x16xf32>
    %11 = math.log %10 : vector<1x1x16xf32>
    %c0_7 = arith.constant 0 : index
    %c0_8 = arith.constant 0 : index
    %c0_9 = arith.constant 0 : index
    %12 = vector.load %arg4[%c0_7, %c0_8, %c0_9] : memref<1x1x16xf32, #tpu.memory_space<vmem>>, vector<1x1x16xf32>
    %13 = arith.addf %12, %11 : vector<1x1x16xf32>
    %c0_10 = arith.constant 0 : index
    %c0_11 = arith.constant 0 : index
    %c0_12 = arith.constant 0 : index
    %14 = vector.load %arg4[%c0_10, %c0_11, %c0_12] : memref<1x1x16xf32, #tpu.memory_space<vmem>>, vector<1x1x16xf32>
    tpu.vector_store %arg4[%c0_10, %c0_11, %c0_12], %13 {strides = array<i32>} : memref<1x1x16xf32, #tpu.memory_space<vmem>>, vector<1x1x16xf32>,
    return
  }
  func.func @transform_0(%arg0: i32, %arg1: i32) -> (i32, i32, i32) {
    %c0_i32 = arith.constant 0 : i32
    %c0_i32_0 = arith.constant 0 : i32
    return %arg0, %c0_i32, %arg1 : i32, i32, i32
  }
  func.func @transform_1(%arg0: i32, %arg1: i32) -> (i32, i32, i32) {
    %c0_i32 = arith.constant 0 : i32
    %c0_i32_0 = arith.constant 0 : i32
    return %arg0, %c0_i32, %arg1 : i32, i32, i32
  }
  func.func @transform_2(%arg0: i32, %arg1: i32) -> (i32, i32, i32) {
    %c0_i32 = arith.constant 0 : i32
    %c0_i32_0 = arith.constant 0 : i32
    %c0_i32_1 = arith.constant 0 : i32
    return %arg0, %c0_i32, %c0_i32_0 : i32, i32, i32
  }
}

</mosaic_0001>

<llo_original>
// kernel: vis_loss.1
$region0: #{vis_loss.1}
  #allocation0 [shape = 'u32[]', space=smem, size = 0x4, offset = 0x4, fixed_abs, tag = 'smem constant byte address 0x4 - core index']
  #allocation1 [shape = 'u32[72,128]{1,0:T(1,128)}', space=vmem, size = 0x9000, scoped, tag = 'internal scratch']
  %s0 = inlined_call_operand.hbm [shape: f32[2,4,16], index: 0, kind: input, shape index: {}]
  %s1 = inlined_call_operand.hbm [shape: f32[2,4,16], index: 1, kind: input, shape index: {}]
  %s2 = inlined_call_operand.vmem [shape: f32[2,1,16], index: 2, kind: output, shape index: {}]
  %s3 = sld [smem:[#allocation0]]
  $region53: #{vis_loss.1} parent=0
    _
  %s5 = ssub.s32 1, %s3
  %s6 = scalar_select 0, %s5, %s3
  $region1: #{vis_loss.1} parent=0
    #allocation2 [shape = 'u8[4096]{0}', space=vmem, size = 0x1000, scoped, tag = 'input window, operand 0']
    #allocation3 [shape = 's32[2]{0}', space=sflag, size = 0x8, scoped, tag = 'scoped memory for vis_loss.1']
    #allocation4 [shape = 'u8[4096]{0}', space=vmem, size = 0x1000, scoped, tag = 'input window, operand 1']
    #allocation5 [shape = 's32[2]{0}', space=sflag, size = 0x8, scoped, tag = 'scoped memory for vis_loss.1']
    %7 = vsyncpa [#allocation3], 0
    %s8 = scalar_lea.sflag [#allocation3], 1
    %9 = vsyncpa %s8, 0
    %10 = vsyncpa [#allocation5], 0
    %s11 = scalar_lea.sflag [#allocation5], 1
    %12 = vsyncpa %s11, 0
    loop: start=0, step=1, limit=4
    $region2: #{vis_loss.1} parent=1 // loop_pre_header
      _
    $region3: #{vis_loss.1} parent=1 // loop_header
      %s14 = sphi 0, %s18
      %p15 = scmp.ge.s32.totalorder %s14, 4
      %s21 = sphi 0, %s33
      %s22 = sphi 0, %s29
      %s23 = sphi 0, %s21
      %s24 = sphi 0, %s22
      %s25 = sphi 0, %s23
      %s26 = sphi 0, %s24
      %s38 = sphi 0, %s40
      %s41 = sphi 0, %s38
      %s42 = sphi 0, %s41
      %s58 = sphi 0, %s42
      %s66 = sphi 0, %s68
      %s69 = sphi 0, %s66
      %s70 = sphi 0, %s69
      %s86 = sphi 0, %s70
      %s92 = sphi 0, %s94
      %s95 = sphi 0, %s92
      %s96 = sphi 0, %s95
      %s112 = sphi 0, %s96
    $region4: #{vis_loss.1} parent=1 // loop_header_branch
      %17 = sbr.rel (%p15) target = $region8
    $region5: #{vis_loss.1} parent=1 // loop_body
      %s19 = ssub.s32 %s14, 1
      %s20 = ssub.s32 %s14, 2
      %s27 = sadd.s32 1, %s22
      %p28 = scmp.ge.s32.totalorder %s27, 1
      %s29 = scalar_select %p28, 0, %s27
      %s30 = sadd.s32 1, %s21
      %s31 = scalar_select %p28, %s30, %s21
      %p32 = scmp.ge.s32.totalorder %s31, 2
      %s33 = scalar_select %p32, 0, %s31
      %s34 = ssub.s32 %s21, %s33
      %s35 = ssub.s32 %s22, %s29
      %s36 = sor.u32 %s34, %s35
      %p37 = scmp.eq.s32.totalorder %s36, 0
      %s39 = sadd.s32 %s38, 1
      %s40 = scalar_select %p37, %s38, %s39
      %p43 = pneg %p37
      %p44 = scmp.eq.s32.totalorder %s14, 1
      %p45 = por %p43, %p44
      %p46 = scmp.ne.s32.totalorder %s38, %s41
      %p47 = scmp.eq.s32.totalorder %s14, 0
      %p48 = por %p46, %p47
      %p49 = scmp.ne.s32.totalorder %s38, %s41
      %p50 = scmp.eq.s32.totalorder %s19, 1
      %p51 = por %p49, %p50
      %p52 = scmp.ne.s32.totalorder %s41, %s42
      %p53 = scmp.eq.s32.totalorder %s19, 0
      %p54 = por %p52, %p53
      %p55 = scmp.ne.s32.totalorder %s41, %s42
      %p56 = scmp.eq.s32.totalorder %s20, 1
      %p57 = por %p55, %p56
      %p59 = scmp.ne.s32.totalorder %s42, %s58
      %p60 = scmp.eq.s32.totalorder %s20, 0
      %p61 = por %p59, %p60
      %s62 = ssub.s32 %s21, %s33
      %s63 = ssub.s32 %s22, %s29
      %s64 = sor.u32 %s62, %s63
      %p65 = scmp.eq.s32.totalorder %s64, 0
      %s67 = sadd.s32 %s66, 1
      %s68 = scalar_select %p65, %s66, %s67
      %p71 = pneg %p65
      %p72 = scmp.eq.s32.totalorder %s14, 1
      %p73 = por %p71, %p72
      %p74 = scmp.ne.s32.totalorder %s66, %s69
      %p75 = scmp.eq.s32.totalorder %s14, 0
      %p76 = por %p74, %p75
      %p77 = scmp.ne.s32.totalorder %s66, %s69
      %p78 = scmp.eq.s32.totalorder %s19, 1
      %p79 = por %p77, %p78
      %p80 = scmp.ne.s32.totalorder %s69, %s70
      %p81 = scmp.eq.s32.totalorder %s19, 0
      %p82 = por %p80, %p81
      %p83 = scmp.ne.s32.totalorder %s69, %s70
      %p84 = scmp.eq.s32.totalorder %s20, 1
      %p85 = por %p83, %p84
      %p87 = scmp.ne.s32.totalorder %s70, %s86
      %p88 = scmp.eq.s32.totalorder %s20, 0
      %p89 = por %p87, %p88
      %s90 = ssub.s32 %s21, %s33
      %p91 = scmp.eq.s32.totalorder %s90, 0
      %s93 = sadd.s32 %s92, 1
      %s94 = scalar_select %p91, %s92, %s93
      %p97 = pneg %p91
      %p98 = scmp.eq.s32.totalorder %s14, 1
      %p99 = por %p97, %p98
      %p100 = scmp.ne.s32.totalorder %s92, %s95
      %p101 = scmp.eq.s32.totalorder %s14, 0
      %p102 = por %p100, %p101
      %p103 = scmp.ne.s32.totalorder %s92, %s95
      %p104 = scmp.eq.s32.totalorder %s19, 1
      %p105 = por %p103, %p104
      %p106 = scmp.ne.s32.totalorder %s95, %s96
      %p107 = scmp.eq.s32.totalorder %s19, 0
      %p108 = por %p106, %p107
      %p109 = scmp.ne.s32.totalorder %s95, %s96
      %p110 = scmp.eq.s32.totalorder %s20, 1
      %p111 = por %p109, %p110
      %p113 = scmp.ne.s32.totalorder %s96, %s112
      %p114 = scmp.eq.s32.totalorder %s20, 0
      %p115 = por %p113, %p114
      %p116 = scmp.le.s32.totalorder 1, %s14
      %p117 = scmp.lt.s32.totalorder %s14, 3
      %p118 = pnand %p116, %p117
      %p119 = pneg %p118
      // Predicated region
      $region9: #{vis_loss.1} parent=5 // pred_check
        _
      $region10: #{vis_loss.1} parent=5 // pred_check_branch
        %121 = sbr.rel (%p118) target = $region12
      $region11: #{vis_loss.1} parent=5 // pred_region
        %s122 = ssub.s32 %s14, 1
      $region12: #{vis_loss.1} parent=5 // pred_fallthru
        _
      %p123 = scmp.lt.s32.totalorder %s14, 2
      // Predicated region
      $region13: #{vis_loss.1} parent=5 // pred_check
        %p124 = pneg %p123
      $region14: #{vis_loss.1} parent=5 // pred_check_branch
        %126 = sbr.rel (%p124) target = $region16
      $region15: #{vis_loss.1} parent=5 // pred_region
        // Predicated region
        $region17: #{vis_loss.1} parent=15 // pred_check
          %p127 = pneg %p48
        $region18: #{vis_loss.1} parent=15 // pred_check_branch
          %129 = sbr.rel (%p127) target = $region20
        $region19: #{vis_loss.1} parent=15 // pred_region
          %s130 = sand.u32 %s38, 1
          %s131 = scalar_lea.sflag [#allocation3], %s130
          %s132 = sand.u32 %s38, 1
          %s133 = smul.addr %s132, 4
          %s134 = scalar_lea.vmem [#allocation2], %s133
          %136 = vsyncadd %s131, 0
          %s137 = sadd.s32 %s22, %s21
          %s138 = smul.addr %s137, 4
          %s139 = scalar_lea.hbm %s0, %s138
          %s141 = sshll.u32 %s139, 4
          %s142 = int_to_ptr.hbm [resolvable:$true] %s141
          %s143 = sshll.u32 %s134, 4
          %s144 = int_to_ptr.vmem [resolvable:$true] %s143
          %146 = dma.hbm_to_vmem [thread:$0]  %s142, 64, %s144, %s131
        $region20: #{vis_loss.1} parent=15 // pred_fallthru
          _
        // Predicated region
        $region21: #{vis_loss.1} parent=15 // pred_check
          %p147 = pneg %p76
        $region22: #{vis_loss.1} parent=15 // pred_check_branch
          %149 = sbr.rel (%p147) target = $region24
        $region23: #{vis_loss.1} parent=15 // pred_region
          %s150 = sand.u32 %s66, 1
          %s151 = scalar_lea.sflag [#allocation5], %s150
          %s152 = sand.u32 %s66, 1
          %s153 = smul.addr %s152, 4
          %s154 = scalar_lea.vmem [#allocation4], %s153
          %156 = vsyncadd %s151, 0
          %s157 = sadd.s32 %s22, %s21
          %s158 = smul.addr %s157, 4
          %s159 = scalar_lea.hbm %s1, %s158
          %s161 = sshll.u32 %s159, 4
          %s162 = int_to_ptr.hbm [resolvable:$true] %s161
          %s163 = sshll.u32 %s154, 4
          %s164 = int_to_ptr.vmem [resolvable:$true] %s163
          %166 = dma.hbm_to_vmem [thread:$0]  %s162, 64, %s164, %s151
        $region24: #{vis_loss.1} parent=15 // pred_fallthru
          _
      $region16: #{vis_loss.1} parent=5 // pred_fallthru
        _
      %p167 = scmp.le.s32.totalorder 1, %s14
      %p168 = scmp.lt.s32.totalorder %s14, 3
      %p169 = pnand %p167, %p168
      %p170 = pneg %p169
      // Predicated region
      $region25: #{vis_loss.1} parent=5 // pred_check
        _
      $region26: #{vis_loss.1} parent=5 // pred_check_branch
        %172 = sbr.rel (%p169) target = $region28
      $region27: #{vis_loss.1} parent=5 // pred_region
        %s173 = ssub.s32 %s14, 1
        %s174 = sand.u32 %s41, 1
        %s175 = scalar_lea.sflag [#allocation3], %s174
        %s176 = sand.u32 %s41, 1
        %s177 = smul.addr %s176, 4
        %s178 = scalar_lea.vmem [#allocation2], %s177
        // Predicated region
        $region29: #{vis_loss.1} parent=27 // pred_check
          %p179 = pneg %p54
        $region30: #{vis_loss.1} parent=27 // pred_check_branch
          %181 = sbr.rel (%p179) target = $region32
        $region31: #{vis_loss.1} parent=27 // pred_region
          %183 = dma.done %s175, 64
        $region32: #{vis_loss.1} parent=27 // pred_fallthru
          _
        %s184 = sand.u32 %s69, 1
        %s185 = scalar_lea.sflag [#allocation5], %s184
        %s186 = sand.u32 %s69, 1
        %s187 = smul.addr %s186, 4
        %s188 = scalar_lea.vmem [#allocation4], %s187
        // Predicated region
        $region33: #{vis_loss.1} parent=27 // pred_check
          %p189 = pneg %p82
        $region34: #{vis_loss.1} parent=27 // pred_check_branch
          %191 = sbr.rel (%p189) target = $region36
        $region35: #{vis_loss.1} parent=27 // pred_region
          %193 = dma.done %s185, 64
        $region36: #{vis_loss.1} parent=27 // pred_fallthru
          _
        %s194 = sand.u32 %s41, 1
        %s195 = scalar_lea.sflag [#allocation3], %s194
        %s196 = sand.u32 %s41, 1
        %s197 = smul.addr %s196, 4
        %s198 = scalar_lea.vmem [#allocation2], %s197
        %p199 = pneg %p54
        %p200 = pneg %p51
        %s201 = sand.u32 %s69, 1
        %s202 = scalar_lea.sflag [#allocation5], %s201
        %s203 = sand.u32 %s69, 1
        %s204 = smul.addr %s203, 4
        %s205 = scalar_lea.vmem [#allocation4], %s204
        %p206 = pneg %p82
        %p207 = pneg %p79
        %p208 = pneg %p108
        %p209 = pneg %p105
        %p210 = scmp.lt.s32.totalorder %s23, 1
        %s211 = scalar_select %p210, %s23, 1
        %s212 = scalar_lea.vmem %s2, %s211
        %p213 = scmp.lt.s32.totalorder %s23, 1
        %s214 = scalar_select %p213, %s23, 1
        %s215 = scalar_lea.vmem %s2, %s214
        %p216 = scmp.eq.s32.totalorder %s24, 0
        // Predicated region
        $region37: #{vis_loss.1} parent=27 // pred_check
          %p217 = pneg %p216
        $region38: #{vis_loss.1} parent=27 // pred_check_branch
          %219 = sbr.rel (%p217) target = $region40
        $region39: #{vis_loss.1} parent=27 // pred_region
          %vm220 = vcmask 122880
          %221 = vst.msk [vmem:[%s215] sm:$0x1] %vm220, 0.0
        $region40: #{vis_loss.1} parent=27 // pred_fallthru
          _
        %v222 = vld [vmem:[%s178] sm:$0xf]
        %v223 = vld [vmem:[%s188] sm:$0xf]
        %v224 = vsub.f32 %v222, %v223
        %v225 = vmul.f32 %v224, %v224
        %vm226 = vcmask 125952
        %v227 = vsel %vm226, %v225, 0.0
        %v228 = vrot.slane %v227, 4
        %v229 = vadd.f32 %v227, %v228
        %v230 = vrot.slane %v229, 2
        %v231 = vadd.f32 %v229, %v230
        %v232 = vrot.slane %v231, 1
        %v233 = vadd.f32 %v231, %v232
        %v234 = vadd.f32 %v233, 0.0016
        %v235 = vlog2.pop %v234
        %v236 = vmul.f32 %v235, 0.6931472
        %v237 = vld [vmem:[%s215] sm:$0x1]
        %v238 = vadd.f32 %v237, %v236
        %vm239 = vcmask 122880
        %240 = vst.msk [vmem:[%s215] sm:$0x1] %vm239, %v238
        %p241 = scmp.lt.s32.totalorder %s23, 1
        %s242 = scalar_select %p241, %s23, 1
        %s243 = scalar_lea.vmem %s2, %s242
        // Predicated region
        $region41: #{vis_loss.1} parent=27 // pred_check
          %p244 = pneg %p105
        $region42: #{vis_loss.1} parent=27 // pred_check_branch
          %246 = sbr.rel (%p244) target = $region44
        $region43: #{vis_loss.1} parent=27 // pred_region
          _
        $region44: #{vis_loss.1} parent=27 // pred_fallthru
          _
      $region28: #{vis_loss.1} parent=5 // pred_fallthru
        _
      %p247 = scmp.le.s32.totalorder 2, %s14
      // Predicated region
      $region45: #{vis_loss.1} parent=5 // pred_check
        %p248 = pneg %p247
      $region46: #{vis_loss.1} parent=5 // pred_check_branch
        %250 = sbr.rel (%p248) target = $region48
      $region47: #{vis_loss.1} parent=5 // pred_region
        %s251 = ssub.s32 %s14, 2
        // Predicated region
        $region49: #{vis_loss.1} parent=47 // pred_check
          %p252 = pneg %p111
        $region50: #{vis_loss.1} parent=47 // pred_check_branch
          %254 = sbr.rel (%p252) target = $region52
        $region51: #{vis_loss.1} parent=47 // pred_region
          %p255 = scmp.lt.s32.totalorder %s25, 1
          %s256 = scalar_select %p255, %s25, 1
          %s257 = scalar_lea.vmem %s2, %s256
        $region52: #{vis_loss.1} parent=47 // pred_fallthru
          _
      $region48: #{vis_loss.1} parent=5 // pred_fallthru
        _
    $region6: #{vis_loss.1} parent=1 // loop_footer
      %s18 = sadd.s32 1, %s14
    $region7: #{vis_loss.1} parent=1 // loop_footer_branch
      %13 = sbr.rel target = $region3
    $region8: #{vis_loss.1} parent=1 // loop_exit
      _
    %258 = vsyncpa [#allocation3], 1
    %s259 = scalar_lea.sflag [#allocation3], 1
    %260 = vsyncpa %s259, 1
    %261 = vsyncpa [#allocation5], 1
    %s262 = scalar_lea.sflag [#allocation5], 1
    %263 = vsyncpa %s262, 1

</llo_original>
